<compile_context>
chip_gen: v6e
topology: v6e:2x2x1
jax: 0.10.0
libtpu: 0.0.40
codegen_flags: <defaults>
</compile_context>

<pallas_src>
import functools

import jax
import jax.numpy as jnp
from jax.experimental import pallas as pl
from jax.experimental.pallas import tpu as pltpu


# ---------------------------------------------------------------------------
# Kernels
# ---------------------------------------------------------------------------

def _agg_sum_relu_kernel(cheb_t_ref, sat_t_ref, rhs_ref, o_ref, acc_ref, *,
                         K, matmul_dtype):
    """Theta-applied-first path (F_in >= F_out).  One step = (batch b, row tile).

    cheb_t_ref: (K, tn, N)     pre-transposed Chebyshev polynomials (row tile)
    sat_t_ref:  (1, tn, N)     pre-transposed spatial attention A_b^T (row tile)
    rhs_ref:    (1, K, N, C)   xw[b, k] = x[b] @ Theta_k, C = F_out*T
    o_ref:      (1, tn, C)
    acc_ref:    (tn, C) f32 scratch accumulator
    """
    sat_t = sat_t_ref[0]                       # (tn, N) = A_b^T row tile
    acc_ref[...] = jnp.zeros_like(acc_ref)
    for k in range(K):                         # K is small (e.g. 3): static unroll
        # (T_k ⊙ A_b)^T = T_k^T ⊙ A_b^T — pure VPU product, no XLU transpose.
        s_k = (cheb_t_ref[k] * sat_t).astype(matmul_dtype)
        acc_ref[...] += jnp.dot(s_k, rhs_ref[0, k],
                                preferred_element_type=jnp.float32)
    o_ref[0] = jnp.maximum(acc_ref[...], 0.0).astype(o_ref.dtype)


def _agg_per_k_kernel(cheb_t_ref, sat_t_ref, x_ref, o_ref, *, K, matmul_dtype):
    """Aggregation-first path (F_in < F_out): emit per-k aggregations.

    cheb_t_ref: (K, tn, N)
    sat_t_ref:  (1, tn, N)
    x_ref:      (1, N, F_in*T)   graph signal, T folded into lanes
    o_ref:      (1, K, tn, F_in*T)  (Theta + ReLU applied by XLA afterwards)
    """
    sat_t = sat_t_ref[0]
    x = x_ref[0]
    for k in range(K):
        s_k = (cheb_t_ref[k] * sat_t).astype(matmul_dtype)
        o_ref[0, k] = jnp.dot(s_k, x, preferred_element_type=jnp.float32
                              ).astype(o_ref.dtype)


# ---------------------------------------------------------------------------
# Wrapper
# ---------------------------------------------------------------------------

def _row_tile(N):
    """Row tile for the output / adjacency rows."""
    if N <= 512:
        return N                      # whole graph per step (typical CISTGNN N≈307)
    for tn in (512, 256, 128, 64, 32, 16, 8):
        if N % tn == 0:
            return tn
    return 256                        # non-dividing fallback: boundary block is masked


def _vmem_limit_bytes(resident_block_bytes):
    """Generation-aware VMEM limit derived from the actual block footprint."""
    cap = 128 * 1024 * 1024           # v5e/v6e physical; v7x reports 64 MiB
    try:
        cap = int(pltpu.get_tpu_info().vmem_capacity_bytes) or cap
    except Exception:
        pass
    cap = max(cap, 32 * 1024 * 1024)
    want = 2 * resident_block_bytes + 8 * 1024 * 1024   # double buffers + headroom
    return int(min(max(want, 16 * 1024 * 1024), int(0.8 * cap)))


def cheb_conv_with_sat(x, spatial_attention, cheb_polynomials, theta, *,
                       use_bf16_matmul=False):
    """
    x:                  (B, N, F_in, T)   -- PyTorch layout
    spatial_attention:  (B, N, N)
    cheb_polynomials:   (K, N, N)
    theta:              (K, F_in, F_out)
    returns:            (B, N, F_out, T)
    """
    B, N, F_in, T = x.shape
    K, _, F_out = theta.shape
    out_dtype = x.dtype
    matmul_dtype = jnp.bfloat16 if use_bf16_matmul else jnp.float32

    # One-time (small) preprocessing by XLA: pre-transpose so the kernel never
    # issues an XLU transpose.
    cheb_t = jnp.transpose(cheb_polynomials, (0, 2, 1)).astype(jnp.float32)
    sat_t = jnp.transpose(spatial_attention, (0, 2, 1)).astype(jnp.float32)

    tn = _row_tile(N)
    n_tiles = pl.cdiv(N, tn)
    sems = ("parallel", "parallel")   # batch and row-tile axes are independent
    f32b = jnp.dtype(jnp.float32).itemsize
    mmb = jnp.dtype(matmul_dtype).itemsize

    if F_in >= F_out:
        # ---- Theta-first: kernel does aggregation + sum over k + ReLU. ----
        C = F_out * T
        rhs = jnp.einsum('bmft,kfo->bkmot', x, theta).reshape(B, K, N, C)
        rhs = rhs.astype(matmul_dtype)          # bf16 in HBM halves its DMA bytes

        block_bytes = (K * tn * N * f32b + tn * N * f32b      # cheb tile, sat tile
                       + K * N * C * mmb                      # rhs (full N)
                       + tn * C * jnp.dtype(out_dtype).itemsize
                       + tn * C * f32b)                       # scratch acc
        out_flat = pl.pallas_call(
            functools.partial(_agg_sum_relu_kernel, K=K, matmul_dtype=matmul_dtype),
            out_shape=jax.ShapeDtypeStruct((B, N, C), out_dtype),
            grid=(B, n_tiles),
            in_specs=[
                pl.BlockSpec((K, tn, N), lambda b, n: (0, n, 0)),     # cheb^T tile
                pl.BlockSpec((1, tn, N), lambda b, n: (b, n, 0)),     # A_b^T tile
                pl.BlockSpec((1, K, N, C), lambda b, n: (b, 0, 0, 0)),  # xw[b] (full N)
            ],
            out_specs=pl.BlockSpec((1, tn, C), lambda b, n: (b, n, 0)),
            scratch_shapes=[pltpu.VMEM((tn, C), jnp.float32)],
            compiler_params=pltpu.CompilerParams(
                dimension_semantics=sems,
                vmem_limit_bytes=_vmem_limit_bytes(block_bytes)),
        )(cheb_t, sat_t, rhs)
        return out_flat.reshape(B, N, F_out, T)

    # ---- F_in < F_out: aggregation-first (cheaper MXU free dim F_in*T). ----
    Cin = F_in * T
    x_flat = x.reshape(B, N, Cin).astype(matmul_dtype)   # free reshape (+ optional bf16)

    block_bytes = (K * tn * N * f32b + tn * N * f32b
                   + N * Cin * mmb
                   + K * tn * Cin * f32b)
    agg = pl.pallas_call(
        functools.partial(_agg_per_k_kernel, K=K, matmul_dtype=matmul_dtype),
        out_shape=jax.ShapeDtypeStruct((B, K, N, Cin), jnp.float32),
        grid=(B, n_tiles),
        in_specs=[
            pl.BlockSpec((K, tn, N), lambda b, n: (0, n, 0)),
            pl.BlockSpec((1, tn, N), lambda b, n: (b, n, 0)),
            pl.BlockSpec((1, N, Cin), lambda b, n: (b, 0, 0)),
        ],
        out_specs=pl.BlockSpec((1, K, tn, Cin), lambda b, n: (b, 0, n, 0)),
        compiler_params=pltpu.CompilerParams(
            dimension_semantics=sems,
            vmem_limit_bytes=_vmem_limit_bytes(block_bytes)),
    )(cheb_t, sat_t, x_flat)

    # Theta contraction (exact FLOPs, no Kronecker blowup) + ReLU by XLA.
    agg = agg.reshape(B, K, N, F_in, T)
    out = jnp.einsum('bknft,kfo->bnot', agg, theta.astype(jnp.float32))
    return jax.nn.relu(out).astype(out_dtype)


# ---------------------------------------------------------------------------
# Pure-JAX reference mirroring the PyTorch loop semantics
# ---------------------------------------------------------------------------

def cheb_conv_with_sat_ref(x, spatial_attention, cheb_polynomials, theta):
    B, N, F_in, T = x.shape
    K, _, F_out = theta.shape
    outputs = []
    for t in range(T):
        graph_signal = x[:, :, :, t]                                      # (B, N, F_in)
        output = jnp.zeros((B, N, F_out), dtype=x.dtype)
        for k in range(K):
            t_k_with_at = cheb_polynomials[k][None] * spatial_attention   # (B, N, N)
            # permute(0,2,1).matmul -> contract over the first adjacency index
            rhs = jnp.einsum('bmn,bmf->bnf', t_k_with_at, graph_signal)
            output = output + rhs @ theta[k]
        outputs.append(output[..., None])
    return jax.nn.relu(jnp.concatenate(outputs, axis=-1))


if __name__ == "__main__":
    # Small shapes consistent with the module's forward:
    #   x: (batch=2, vertices=16, in_channels=4, timesteps=8), K=3, out_channels=8.
    B, N, F_in, F_out, T, K = 2, 16, 4, 8, 8, 3

    key = jax.random.PRNGKey(0)
    kx, ka, kc, kt = jax.random.split(key, 4)

    x = jax.random.normal(kx, (B, N, F_in, T), dtype=jnp.float32)
    spatial_attention = jax.random.uniform(ka, (B, N, N), dtype=jnp.float32)
    cheb_polynomials = jax.random.normal(kc, (K, N, N), dtype=jnp.float32)
    theta = jax.random.normal(kt, (K, F_in, F_out), dtype=jnp.float32) * 0.1

    # Path 1 (F_in < F_out): aggregation-first kernel + XLA Theta/ReLU.
    ref = cheb_conv_with_sat_ref(x, spatial_attention, cheb_polynomials, theta)
    out = jax.block_until_ready(
        cheb_conv_with_sat(x, spatial_attention, cheb_polynomials, theta))
    assert out.shape == (B, N, F_out, T), out.shape
    assert jnp.allclose(out, ref, atol=1e-4, rtol=1e-4), "mismatch (agg-first path)"

    # Path 2 (F_in >= F_out): fused aggregate + sum-over-k + ReLU kernel.
    theta2 = jax.random.normal(kt, (K, F_in, F_in), dtype=jnp.float32) * 0.1
    ref2 = cheb_conv_with_sat_ref(x, spatial_attention, cheb_polynomials, theta2)
    out2 = jax.block_until_ready(
        cheb_conv_with_sat(x, spatial_attention, cheb_polynomials, theta2))
    assert out2.shape == (B, N, F_in, T), out2.shape
    assert jnp.allclose(out2, ref2, atol=1e-4, rtol=1e-4), "mismatch (theta-first path)"

    # bf16 MXU operands with f32 accumulation: loosened tolerance vs f32 reference.
    out_bf16 = jax.block_until_ready(
        cheb_conv_with_sat(x, spatial_attention, cheb_polynomials, theta,
                           use_bf16_matmul=True))
    assert jnp.allclose(out_bf16, ref, atol=5e-2, rtol=5e-2), "mismatch (bf16 path)"

    print("KERNEL_OK")
</pallas_src>

<mosaic_0001>
module attributes {stable_mosaic.version = 11 : i64} {
  func.func @_agg_per_k_kernel(%arg0: i32, %arg1: i32, %arg2: memref<3x16x16xf32, #tpu.memory_space<vmem>>, %arg3: memref<1x16x16xf32, #tpu.memory_space<vmem>>, %arg4: memref<1x16x32xf32, #tpu.memory_space<vmem>>, %arg5: memref<1x3x16x32xf32, #tpu.memory_space<vmem>>) attributes {dimension_semantics = [#tpu.dimension_semantics<parallel>, #tpu.dimension_semantics<parallel>], iteration_bounds = array<i64: 2, 1>, scalar_prefetch = 0 : i64, scratch_operands = 0 : i64, tpu.core_type = #tpu.core_type<tc>, window_params = [{transform_indices = @transform_0, window_bounds = array<i64: 3, 16, 16>}, {transform_indices = @transform_1, window_bounds = array<i64: 1, 16, 16>}, {transform_indices = @transform_2, window_bounds = array<i64: 1, 16, 32>}, {transform_indices = @transform_3, window_bounds = array<i64: 1, 3, 16, 32>}]} {
    %c0 = arith.constant 0 : index
    %c0_0 = arith.constant 0 : index
    %c0_1 = arith.constant 0 : index
    %0 = vector.load %arg3[%c0, %c0_0, %c0_1] : memref<1x16x16xf32, #tpu.memory_space<vmem>>, vector<1x16x16xf32>
    %1 = vector.shape_cast %0 : vector<1x16x16xf32> to vector<16x16xf32>
    %c0_2 = arith.constant 0 : index
    %c0_3 = arith.constant 0 : index
    %c0_4 = arith.constant 0 : index
    %2 = vector.load %arg4[%c0_2, %c0_3, %c0_4] : memref<1x16x32xf32, #tpu.memory_space<vmem>>, vector<1x16x32xf32>
    %3 = vector.shape_cast %2 : vector<1x16x32xf32> to vector<16x32xf32>
    %c0_5 = arith.constant 0 : index
    %c0_6 = arith.constant 0 : index
    %c0_7 = arith.constant 0 : index
    %4 = vector.load %arg2[%c0_5, %c0_6, %c0_7] : memref<3x16x16xf32, #tpu.memory_space<vmem>>, vector<1x16x16xf32>
    %5 = vector.shape_cast %4 : vector<1x16x16xf32> to vector<16x16xf32>
    %6 = arith.mulf %5, %1 : vector<16x16xf32>
    %cst = arith.constant dense<0.000000e+00> : vector<16x32xf32>
    %7 = tpu.matmul %6, %3, %cst {dimension_numbers = #tpu.dot_dimension_numbers<[1], [0], [0], [1], [0, 0, 1, 1], [], []>} : vector<16x16xf32>, vector<16x32xf32>, vector<16x32xf32> -> vector<16x32xf32>
    %c0_8 = arith.constant 0 : index
    %c0_9 = arith.constant 0 : index
    %c0_10 = arith.constant 0 : index
    %c0_11 = arith.constant 0 : index
    %8 = vector.load %arg5[%c0_8, %c0_9, %c0_10, %c0_11] : memref<1x3x16x32xf32, #tpu.memory_space<vmem>>, vector<1x1x16x32xf32>
    %9 = vector.shape_cast %8 : vector<1x1x16x32xf32> to vector<16x32xf32>
    %10 = vector.shape_cast %7 : vector<16x32xf32> to vector<1x1x16x32xf32>
    tpu.vector_store %arg5[%c0_8, %c0_9, %c0_10, %c0_11], %10 {strides = array<i32>} : memref<1x3x16x32xf32, #tpu.memory_space<vmem>>, vector<1x1x16x32xf32>,
    %c1 = arith.constant 1 : index
    %c0_12 = arith.constant 0 : index
    %c0_13 = arith.constant 0 : index
    %11 = vector.load %arg2[%c1, %c0_12, %c0_13] : memref<3x16x16xf32, #tpu.memory_space<vmem>>, vector<1x16x16xf32>
    %12 = vector.shape_cast %11 : vector<1x16x16xf32> to vector<16x16xf32>
    %13 = arith.mulf %12, %1 : vector<16x16xf32>
    %cst_14 = arith.constant dense<0.000000e+00> : vector<16x32xf32>
    %14 = tpu.matmul %13, %3, %cst_14 {dimension_numbers = #tpu.dot_dimension_numbers<[1], [0], [0], [1], [0, 0, 1, 1], [], []>} : vector<16x16xf32>, vector<16x32xf32>, vector<16x32xf32> -> vector<16x32xf32>
    %c0_15 = arith.constant 0 : index
    %c1_16 = arith.constant 1 : index
    %c0_17 = arith.constant 0 : index
    %c0_18 = arith.constant 0 : index
    %15 = vector.load %arg5[%c0_15, %c1_16, %c0_17, %c0_18] : memref<1x3x16x32xf32, #tpu.memory_space<vmem>>, vector<1x1x16x32xf32>
    %16 = vector.shape_cast %15 : vector<1x1x16x32xf32> to vector<16x32xf32>
    %17 = vector.shape_cast %14 : vector<16x32xf32> to vector<1x1x16x32xf32>
    tpu.vector_store %arg5[%c0_15, %c1_16, %c0_17, %c0_18], %17 {strides = array<i32>} : memref<1x3x16x32xf32, #tpu.memory_space<vmem>>, vector<1x1x16x32xf32>,
    %c2 = arith.constant 2 : index
    %c0_19 = arith.constant 0 : index
    %c0_20 = arith.constant 0 : index
    %18 = vector.load %arg2[%c2, %c0_19, %c0_20] : memref<3x16x16xf32, #tpu.memory_space<vmem>>, vector<1x16x16xf32>
    %19 = vector.shape_cast %18 : vector<1x16x16xf32> to vector<16x16xf32>
    %20 = arith.mulf %19, %1 : vector<16x16xf32>
    %cst_21 = arith.constant dense<0.000000e+00> : vector<16x32xf32>
    %21 = tpu.matmul %20, %3, %cst_21 {dimension_numbers = #tpu.dot_dimension_numbers<[1], [0], [0], [1], [0, 0, 1, 1], [], []>} : vector<16x16xf32>, vector<16x32xf32>, vector<16x32xf32> -> vector<16x32xf32>
    %c0_22 = arith.constant 0 : index
    %c2_23 = arith.constant 2 : index
    %c0_24 = arith.constant 0 : index
    %c0_25 = arith.constant 0 : index
    %22 = vector.load %arg5[%c0_22, %c2_23, %c0_24, %c0_25] : memref<1x3x16x32xf32, #tpu.memory_space<vmem>>, vector<1x1x16x32xf32>
    %23 = vector.shape_cast %22 : vector<1x1x16x32xf32> to vector<16x32xf32>
    %24 = vector.shape_cast %21 : vector<16x32xf32> to vector<1x1x16x32xf32>
    tpu.vector_store %arg5[%c0_22, %c2_23, %c0_24, %c0_25], %24 {strides = array<i32>} : memref<1x3x16x32xf32, #tpu.memory_space<vmem>>, vector<1x1x16x32xf32>,
    return
  }
  func.func @transform_0(%arg0: i32, %arg1: i32) -> (i32, i32, i32) {
    %c0_i32 = arith.constant 0 : i32
    %c0_i32_0 = arith.constant 0 : i32
    %c0_i32_1 = arith.constant 0 : i32
    return %c0_i32, %arg1, %c0_i32_0 : i32, i32, i32
  }
  func.func @transform_1(%arg0: i32, %arg1: i32) -> (i32, i32, i32) {
    %c0_i32 = arith.constant 0 : i32
    %c0_i32_0 = arith.constant 0 : i32
    return %arg0, %arg1, %c0_i32 : i32, i32, i32
  }
  func.func @transform_2(%arg0: i32, %arg1: i32) -> (i32, i32, i32) {
    %c0_i32 = arith.constant 0 : i32
    %c0_i32_0 = arith.constant 0 : i32
    %c0_i32_1 = arith.constant 0 : i32
    return %arg0, %c0_i32, %c0_i32_0 : i32, i32, i32
  }
  func.func @transform_3(%arg0: i32, %arg1: i32) -> (i32, i32, i32, i32) {
    %c0_i32 = arith.constant 0 : i32
    %c0_i32_0 = arith.constant 0 : i32
    %c0_i32_1 = arith.constant 0 : i32
    return %arg0, %c0_i32, %arg1, %c0_i32_0 : i32, i32, i32, i32
  }
}

</mosaic_0001>

<llo_original>
// kernel: tpu_custom_call.1
$region0: #{tpu_custom_call.1}
  #allocation0 [shape = 'u32[]', space=smem, size = 0x4, offset = 0x4, fixed_abs, tag = 'smem constant byte address 0x4 - core index']
  #allocation1 [shape = 'u32[144,128]{1,0:T(1,128)}', space=vmem, size = 0x12000, scoped, tag = 'internal scratch']
  %s0 = inlined_call_operand.hbm [shape: f32[3,16,16], index: 0, kind: input, shape index: {}]
  %s1 = inlined_call_operand.hbm [shape: f32[2,16,16], index: 1, kind: input, shape index: {}]
  %s2 = inlined_call_operand.hbm [shape: f32[2,16,32], index: 2, kind: input, shape index: {}]
  %s3 = inlined_call_operand.hbm [shape: f32[2,3,16,32], index: 3, kind: output, shape index: {}]
  %s4 = sld [smem:[#allocation0]]
  $region57: #{tpu_custom_call.1} parent=0
    _
  %s6 = ssub.s32 1, %s4
  %s7 = scalar_select 0, %s6, %s4
  $region1: #{tpu_custom_call.1} parent=0
    #allocation2 [shape = 'u8[24576]{0}', space=vmem, size = 0x6000, scoped, tag = 'input window, operand 0, single buffered']
    #allocation3 [shape = 's32[2]{0}', space=sflag, size = 0x8, scoped, tag = 'scoped memory for tpu_custom_call.1']
    #allocation4 [shape = 's32[2]{0}', space=sflag, size = 0x8, scoped, tag = 'scoped memory for tpu_custom_call.1']
    #allocation5 [shape = 'u8[16384]{0}', space=vmem, size = 0x4000, scoped, tag = 'input window, operand 1']
    #allocation6 [shape = 's32[2]{0}', space=sflag, size = 0x8, scoped, tag = 'scoped memory for tpu_custom_call.1']
    #allocation7 [shape = 'u8[16384]{0}', space=vmem, size = 0x4000, scoped, tag = 'input window, operand 2']
    #allocation8 [shape = 'u8[49152]{0}', space=vmem, size = 0xc000, scoped, tag = 'output window, operand 0']
    %8 = vsyncpa [#allocation3], 0
    %9 = vsyncpa [#allocation6], 0
    %s10 = scalar_lea.sflag [#allocation6], 1
    %11 = vsyncpa %s10, 0
    %12 = vsyncpa [#allocation4], 0
    %s13 = scalar_lea.sflag [#allocation4], 1
    %14 = vsyncpa %s13, 0
    loop: start=0, step=1, limit=4
    $region2: #{tpu_custom_call.1} parent=1 // loop_pre_header
      _
    $region3: #{tpu_custom_call.1} parent=1 // loop_header
      %s16 = sphi 0, %s20
      %p17 = scmp.ge.s32.totalorder %s16, 4
      %s23 = sphi 0, %s35
      %s24 = sphi 0, %s31
      %s25 = sphi 0, %s23
      %s26 = sphi 0, %s24
      %s27 = sphi 0, %s25
      %s28 = sphi 0, %s26
      %s38 = sphi 0, %s40
      %s41 = sphi 0, %s38
      %s42 = sphi 0, %s41
      %s58 = sphi 0, %s42
      %s66 = sphi 0, %s68
      %s69 = sphi 0, %s66
      %s70 = sphi 0, %s69
      %s86 = sphi 0, %s70
      %s92 = sphi 0, %s94
      %s95 = sphi 0, %s92
      %s96 = sphi 0, %s95
      %s112 = sphi 0, %s96
      %s120 = sphi 0, %s122
      %s123 = sphi 0, %s120
      %s124 = sphi 0, %s123
      %s140 = sphi 0, %s124
    $region4: #{tpu_custom_call.1} parent=1 // loop_header_branch
      %19 = sbr.rel (%p17) target = $region8
    $region5: #{tpu_custom_call.1} parent=1 // loop_body
      %s21 = ssub.s32 %s16, 1
      %s22 = ssub.s32 %s16, 2
      %s29 = sadd.s32 1, %s24
      %p30 = scmp.ge.s32.totalorder %s29, 1
      %s31 = scalar_select %p30, 0, %s29
      %s32 = sadd.s32 1, %s23
      %s33 = scalar_select %p30, %s32, %s23
      %p34 = scmp.ge.s32.totalorder %s33, 2
      %s35 = scalar_select %p34, 0, %s33
      %s36 = ssub.s32 %s24, %s31
      %p37 = scmp.eq.s32.totalorder %s36, 0
      %s39 = sadd.s32 %s38, 1
      %s40 = scalar_select %p37, %s38, %s39
      %p43 = pneg %p37
      %p44 = scmp.eq.s32.totalorder %s16, 1
      %p45 = por %p43, %p44
      %p46 = scmp.ne.s32.totalorder %s38, %s41
      %p47 = scmp.eq.s32.totalorder %s16, 0
      %p48 = por %p46, %p47
      %p49 = scmp.ne.s32.totalorder %s38, %s41
      %p50 = scmp.eq.s32.totalorder %s21, 1
      %p51 = por %p49, %p50
      %p52 = scmp.ne.s32.totalorder %s41, %s42
      %p53 = scmp.eq.s32.totalorder %s21, 0
      %p54 = por %p52, %p53
      %p55 = scmp.ne.s32.totalorder %s41, %s42
      %p56 = scmp.eq.s32.totalorder %s22, 1
      %p57 = por %p55, %p56
      %p59 = scmp.ne.s32.totalorder %s42, %s58
      %p60 = scmp.eq.s32.totalorder %s22, 0
      %p61 = por %p59, %p60
      %s62 = ssub.s32 %s23, %s35
      %s63 = ssub.s32 %s24, %s31
      %s64 = sor.u32 %s62, %s63
      %p65 = scmp.eq.s32.totalorder %s64, 0
      %s67 = sadd.s32 %s66, 1
      %s68 = scalar_select %p65, %s66, %s67
      %p71 = pneg %p65
      %p72 = scmp.eq.s32.totalorder %s16, 1
      %p73 = por %p71, %p72
      %p74 = scmp.ne.s32.totalorder %s66, %s69
      %p75 = scmp.eq.s32.totalorder %s16, 0
      %p76 = por %p74, %p75
      %p77 = scmp.ne.s32.totalorder %s66, %s69
      %p78 = scmp.eq.s32.totalorder %s21, 1
      %p79 = por %p77, %p78
      %p80 = scmp.ne.s32.totalorder %s69, %s70
      %p81 = scmp.eq.s32.totalorder %s21, 0
      %p82 = por %p80, %p81
      %p83 = scmp.ne.s32.totalorder %s69, %s70
      %p84 = scmp.eq.s32.totalorder %s22, 1
      %p85 = por %p83, %p84
      %p87 = scmp.ne.s32.totalorder %s70, %s86
      %p88 = scmp.eq.s32.totalorder %s22, 0
      %p89 = por %p87, %p88
      %s90 = ssub.s32 %s23, %s35
      %p91 = scmp.eq.s32.totalorder %s90, 0
      %s93 = sadd.s32 %s92, 1
      %s94 = scalar_select %p91, %s92, %s93
      %p97 = pneg %p91
      %p98 = scmp.eq.s32.totalorder %s16, 1
      %p99 = por %p97, %p98
      %p100 = scmp.ne.s32.totalorder %s92, %s95
      %p101 = scmp.eq.s32.totalorder %s16, 0
      %p102 = por %p100, %p101
      %p103 = scmp.ne.s32.totalorder %s92, %s95
      %p104 = scmp.eq.s32.totalorder %s21, 1
      %p105 = por %p103, %p104
      %p106 = scmp.ne.s32.totalorder %s95, %s96
      %p107 = scmp.eq.s32.totalorder %s21, 0
      %p108 = por %p106, %p107
      %p109 = scmp.ne.s32.totalorder %s95, %s96
      %p110 = scmp.eq.s32.totalorder %s22, 1
      %p111 = por %p109, %p110
      %p113 = scmp.ne.s32.totalorder %s96, %s112
      %p114 = scmp.eq.s32.totalorder %s22, 0
      %p115 = por %p113, %p114
      %s116 = ssub.s32 %s23, %s35
      %s117 = ssub.s32 %s24, %s31
      %s118 = sor.u32 %s116, %s117
      %p119 = scmp.eq.s32.totalorder %s118, 0
      %s121 = sadd.s32 %s120, 1
      %s122 = scalar_select %p119, %s120, %s121
      %p125 = pneg %p119
      %p126 = scmp.eq.s32.totalorder %s16, 1
      %p127 = por %p125, %p126
      %p128 = scmp.ne.s32.totalorder %s120, %s123
      %p129 = scmp.eq.s32.totalorder %s16, 0
      %p130 = por %p128, %p129
      %p131 = scmp.ne.s32.totalorder %s120, %s123
      %p132 = scmp.eq.s32.totalorder %s21, 1
      %p133 = por %p131, %p132
      %p134 = scmp.ne.s32.totalorder %s123, %s124
      %p135 = scmp.eq.s32.totalorder %s21, 0
      %p136 = por %p134, %p135
      %p137 = scmp.ne.s32.totalorder %s123, %s124
      %p138 = scmp.eq.s32.totalorder %s22, 1
      %p139 = por %p137, %p138
      %p141 = scmp.ne.s32.totalorder %s124, %s140
      %p142 = scmp.eq.s32.totalorder %s22, 0
      %p143 = por %p141, %p142
      %p144 = scmp.le.s32.totalorder 1, %s16
      %p145 = scmp.lt.s32.totalorder %s16, 3
      %p146 = pnand %p144, %p145
      %p147 = pneg %p146
      // Predicated region
      $region9: #{tpu_custom_call.1} parent=5 // pred_check
        _
      $region10: #{tpu_custom_call.1} parent=5 // pred_check_branch
        %149 = sbr.rel (%p146) target = $region12
      $region11: #{tpu_custom_call.1} parent=5 // pred_region
        %s150 = ssub.s32 %s16, 1
        // Predicated region
        $region13: #{tpu_custom_call.1} parent=11 // pred_check
          %p151 = pneg %p54
        $region14: #{tpu_custom_call.1} parent=11 // pred_check_branch
          %153 = sbr.rel (%p151) target = $region16
        $region15: #{tpu_custom_call.1} parent=11 // pred_region
          %s154 = smul.u32 2, %s26
          %s156 = ssub.s32 768, 768
          %157 = vsyncadd [#allocation3], %s156
          %s158 = smul.addr %s154, 128
          %s159 = scalar_lea.hbm %s0, %s158
          %s160 = sshll.u32 [#allocation2], 4
          %s161 = int_to_ptr.vmem [resolvable:$true] %s160
          %166 = dma.hbm_to_vmem [thread:$0]  %s159, 768, %s161, [#allocation3], 128, 128, 8
        $region16: #{tpu_custom_call.1} parent=11 // pred_fallthru
          _
      $region12: #{tpu_custom_call.1} parent=5 // pred_fallthru
        _
      %p167 = scmp.lt.s32.totalorder %s16, 2
      // Predicated region
      $region17: #{tpu_custom_call.1} parent=5 // pred_check
        %p168 = pneg %p167
      $region18: #{tpu_custom_call.1} parent=5 // pred_check_branch
        %170 = sbr.rel (%p168) target = $region20
      $region19: #{tpu_custom_call.1} parent=5 // pred_region
        // Predicated region
        $region21: #{tpu_custom_call.1} parent=19 // pred_check
          %p171 = pneg %p76
        $region22: #{tpu_custom_call.1} parent=19 // pred_check_branch
          %173 = sbr.rel (%p171) target = $region24
        $region23: #{tpu_custom_call.1} parent=19 // pred_region
          %s174 = sand.u32 %s16, 1
          %s175 = scalar_lea.sflag [#allocation6], %s174
          %s176 = sand.u32 %s66, 1
          %s177 = smul.addr %s176, 16
          %s178 = scalar_lea.vmem [#allocation5], %s177
          %s179 = smul.u32 2, %s24
          %s181 = ssub.s32 256, 256
          %182 = vsyncadd %s175, %s181
          %s183 = smul.addr %s23, 2
          %s184 = sadd.s32 %s179, %s183
          %s185 = smul.addr %s184, 128
          %s186 = scalar_lea.hbm %s1, %s185
          %s187 = sshll.u32 %s178, 4
          %s188 = int_to_ptr.vmem [resolvable:$true] %s187
          %193 = dma.hbm_to_vmem [thread:$0]  %s186, 256, %s188, %s175, 128, 128, 8
        $region24: #{tpu_custom_call.1} parent=19 // pred_fallthru
          _
        // Predicated region
        $region25: #{tpu_custom_call.1} parent=19 // pred_check
          %p194 = pneg %p102
        $region26: #{tpu_custom_call.1} parent=19 // pred_check_branch
          %196 = sbr.rel (%p194) target = $region28
        $region27: #{tpu_custom_call.1} parent=19 // pred_region
          %s197 = sand.u32 %s16, 1
          %s198 = scalar_lea.sflag [#allocation6], %s197
          %s199 = sand.u32 %s92, 1
          %s200 = smul.addr %s199, 16
          %s201 = scalar_lea.vmem [#allocation7], %s200
          %s203 = ssub.s32 256, 256
          %204 = vsyncadd %s198, %s203
          %s205 = smul.addr %s23, 2
          %s206 = smul.addr %s205, 128
          %s207 = scalar_lea.hbm %s2, %s206
          %s208 = sshll.u32 %s201, 4
          %s209 = int_to_ptr.vmem [resolvable:$true] %s208
          %214 = dma.hbm_to_vmem [thread:$0]  %s207, 256, %s209, %s198, 128, 128, 8
        $region28: #{tpu_custom_call.1} parent=19 // pred_fallthru
          _
      $region20: #{tpu_custom_call.1} parent=5 // pred_fallthru
        _
      %p215 = scmp.le.s32.totalorder 1, %s16
      %p216 = scmp.lt.s32.totalorder %s16, 3
      %p217 = pnand %p215, %p216
      %p218 = pneg %p217
      // Predicated region
      $region29: #{tpu_custom_call.1} parent=5 // pred_check
        _
      $region30: #{tpu_custom_call.1} parent=5 // pred_check_branch
        %220 = sbr.rel (%p217) target = $region32
      $region31: #{tpu_custom_call.1} parent=5 // pred_region
        %s221 = ssub.s32 %s16, 1
        // Predicated region
        $region33: #{tpu_custom_call.1} parent=31 // pred_check
          %p222 = pneg %p54
        $region34: #{tpu_custom_call.1} parent=31 // pred_check_branch
          %224 = sbr.rel (%p222) target = $region36
        $region35: #{tpu_custom_call.1} parent=31 // pred_region
          %225 = dma.done [#allocation3], 768
        $region36: #{tpu_custom_call.1} parent=31 // pred_fallthru
          _
        %s226 = sand.u32 %s21, 1
        %s227 = scalar_lea.sflag [#allocation6], %s226
        %s228 = sand.u32 %s69, 1
        %s229 = smul.addr %s228, 16
        %s230 = scalar_lea.vmem [#allocation5], %s229
        // Predicated region
        $region37: #{tpu_custom_call.1} parent=31 // pred_check
          %p231 = pneg %p82
        $region38: #{tpu_custom_call.1} parent=31 // pred_check_branch
          %233 = sbr.rel (%p231) target = $region40
        $region39: #{tpu_custom_call.1} parent=31 // pred_region
          %234 = dma.done %s227, 256
        $region40: #{tpu_custom_call.1} parent=31 // pred_fallthru
          _
        %s235 = sand.u32 %s21, 1
        %s236 = scalar_lea.sflag [#allocation6], %s235
        %s237 = sand.u32 %s95, 1
        %s238 = smul.addr %s237, 16
        %s239 = scalar_lea.vmem [#allocation7], %s238
        // Predicated region
        $region41: #{tpu_custom_call.1} parent=31 // pred_check
          %p240 = pneg %p108
        $region42: #{tpu_custom_call.1} parent=31 // pred_check_branch
          %242 = sbr.rel (%p240) target = $region44
        $region43: #{tpu_custom_call.1} parent=31 // pred_region
          %243 = dma.done %s236, 256
        $region44: #{tpu_custom_call.1} parent=31 // pred_fallthru
          _
        %p244 = pneg %p54
        %p245 = pneg %p51
        %s246 = sand.u32 %s21, 1
        %s247 = scalar_lea.sflag [#allocation6], %s246
        %s248 = sand.u32 %s69, 1
        %s249 = smul.addr %s248, 16
        %s250 = scalar_lea.vmem [#allocation5], %s249
        %p251 = pneg %p82
        %p252 = pneg %p79
        %s253 = sand.u32 %s21, 1
        %s254 = scalar_lea.sflag [#allocation6], %s253
        %s255 = sand.u32 %s95, 1
        %s256 = smul.addr %s255, 16
        %s257 = scalar_lea.vmem [#allocation7], %s256
        %p258 = pneg %p108
        %p259 = pneg %p105
        %p260 = pneg %p136
        %p261 = pneg %p133
        %s262 = sand.u32 %s123, 1
        %s263 = scalar_lea.sflag [#allocation4], %s262
        %s264 = sand.u32 %s123, 1
        %s265 = smul.addr %s264, 48
        %s266 = scalar_lea.vmem [#allocation8], %s265
        %s267 = smul.u32 2, %s26
        %s268 = smul.u32 2, %s26
        %s269 = smul.u32 2, %s26
        %v270 = vld [vmem:[%s230] sm:$0xff]
        %v271 = vld [vmem:[%s230 + $0x8] sm:$0xff]
        %v272 = vld [vmem:[%s239] sm:$0xff]
        %v273 = vld [vmem:[%s239 + $0x8] sm:$0xff]
        %v274 = vld [vmem:[#allocation2] sm:$0xff]
        %v275 = vld [vmem:[#allocation2 + $0x8] sm:$0xff]
        %v276 = vmul.f32 %v274, %v270
        %v277 = vmul.f32 %v275, %v271
        %vm278 = vcmask 130048
        %v280 = vsel %vm278, %v276, 0
        %v283 = vsel %vm278, %v277, 0
        %285 = vmatprep.subr.mxu0 0.0
        %286 = vmatpush1.msra.mxu0 0.0
        %287 = vmatprep.subr.mxu0 0.0
        %288 = vmatpush1.msra.mxu0 0.0
        %289 = vmatprep.subr.mxu0 0.0
        %290 = vmatpush1.msra.mxu0 0.0
        %291 = vmatprep.subr.mxu0 0.0
        %292 = vmatpush1.msra.mxu0 0.0
        %293 = vmatprep.subr.mxu0 0.0
        %294 = vmatpush1.msra.mxu0 0.0
        %295 = vmatprep.subr.mxu0 0.0
        %296 = vmatpush1.msra.mxu0 0.0
        %297 = vmatprep.subr.mxu0 0.0
        %298 = vmatpush1.msra.mxu0 0.0
        %299 = vmatprep.subr.mxu0 0.0
        %300 = vmatpush1.msra.mxu0 0.0
        %301 = vmatprep.subr.mxu0 0.0
        %302 = vmatpush1.msra.mxu0 0.0
        %303 = vmatprep.subr.mxu0 0.0
        %304 = vmatpush1.msra.mxu0 0.0
        %305 = vmatprep.subr.mxu0 0.0
        %306 = vmatpush1.msra.mxu0 0.0
        %307 = vmatprep.subr.mxu0 0.0
        %308 = vmatpush1.msra.mxu0 0.0
        %309 = vmatprep.subr.mxu0 0.0
        %310 = vmatpush1.msra.mxu0 0.0
        %311 = vmatprep.subr.mxu0 0.0
        %312 = vmatpush1.msra.mxu0 0.0
        %313 = vmatprep.subr.mxu0 0.0
        %314 = vmatpush1.msra.mxu0 %v273
        %315 = vmatprep.subr.mxu0 0.0
        %316 = vmatpush1.msra.mxu0 %v272
        %317 = vmatprep.subr.mxu0 0.0
        %318 = vmatpush2.msra.mxu0 0.0
        %319 = vmatprep.subr.mxu0 0.0
        %320 = vmatpush2.msra.mxu0 0.0
        %321 = vmatprep.subr.mxu0 0.0
        %322 = vmatpush2.msra.mxu0 0.0
        %323 = vmatprep.subr.mxu0 0.0
        %324 = vmatpush2.msra.mxu0 0.0
        %325 = vmatprep.subr.mxu0 0.0
        %326 = vmatpush2.msra.mxu0 0.0
        %327 = vmatprep.subr.mxu0 0.0
        %328 = vmatpush2.msra.mxu0 0.0
        %329 = vmatprep.subr.mxu0 0.0
        %330 = vmatpush2.msra.mxu0 0.0
        %331 = vmatprep.subr.mxu0 0.0
        %332 = vmatpush2.msra.mxu0 0.0
        %333 = vmatprep.subr.mxu0 0.0
        %334 = vmatpush2.msra.mxu0 0.0
        %335 = vmatprep.subr.mxu0 0.0
        %336 = vmatpush2.msra.mxu0 0.0
        %337 = vmatprep.subr.mxu0 0.0
        %338 = vmatpush2.msra.mxu0 0.0
        %339 = vmatprep.subr.mxu0 0.0
        %340 = vmatpush2.msra.mxu0 0.0
        %341 = vmatprep.subr.mxu0 0.0
        %342 = vmatpush2.msra.mxu0 0.0
        %343 = vmatprep.subr.mxu0 0.0
        %344 = vmatpush2.msra.mxu0 0.0
        %345 = vmatprep.subr.mxu0 0.0
        %346 = vmatpush2.msra.mxu0 0.0
        %347 = vmatprep.subr.mxu0 0.0
        %348 = vmatpush2.msra.mxu0 0.0
        %349 = vmatprep.mubr.f32.mxu0 0.0
        %350 = vmatmul.mubr.f32.gmra.mxu0 %v280
        %v351 = vpop.f32.mrf.mxu0
        %v352 = vadd.f32 0.0, %v351
        %v353 = vpop.f32.mrf.mxu0
        %354 = vmatprep.mubr.f32.mxu0 0.0
        %355 = vmatmul.mubr.f32.gmra.mxu0 %v283
        %v356 = vpop.f32.mrf.mxu0
        %v357 = vadd.f32 0.0, %v356
        %v358 = vpop.f32.mrf.mxu0
        %359 = vdwg.mxu0
        %vm360 = vcmask 261120
        %361 = vst.msk [vmem:[%s266] sm:$0xff] %vm360, %v352
        %362 = vst.msk [vmem:[%s266 + $0x8] sm:$0xff] %vm360, %v357
        %s363 = scalar_lea.vmem [#allocation2], 16
        %v364 = vld [vmem:[%s363] sm:$0xff]
        %v365 = vld [vmem:[%s363 + $0x8] sm:$0xff]
        %v366 = vmul.f32 %v364, %v270
        %v367 = vmul.f32 %v365, %v271
        %v369 = vsel %vm278, %v366, 0
        %v372 = vsel %vm278, %v367, 0
        %374 = vmatprep.subr.mxu0 0.0
        %375 = vmatpush1.msra.mxu0 0.0
        %376 = vmatprep.subr.mxu0 0.0
        %377 = vmatpush1.msra.mxu0 0.0
        %378 = vmatprep.subr.mxu0 0.0
        %379 = vmatpush1.msra.mxu0 0.0
        %380 = vmatprep.subr.mxu0 0.0
        %381 = vmatpush1.msra.mxu0 0.0
        %382 = vmatprep.subr.mxu0 0.0
        %383 = vmatpush1.msra.mxu0 0.0
        %384 = vmatprep.subr.mxu0 0.0
        %385 = vmatpush1.msra.mxu0 0.0
        %386 = vmatprep.subr.mxu0 0.0
        %387 = vmatpush1.msra.mxu0 0.0
        %388 = vmatprep.subr.mxu0 0.0
        %389 = vmatpush1.msra.mxu0 0.0
        %390 = vmatprep.subr.mxu0 0.0
        %391 = vmatpush1.msra.mxu0 0.0
        %392 = vmatprep.subr.mxu0 0.0
        %393 = vmatpush1.msra.mxu0 0.0
        %394 = vmatprep.subr.mxu0 0.0
        %395 = vmatpush1.msra.mxu0 0.0
        %396 = vmatprep.subr.mxu0 0.0
        %397 = vmatpush1.msra.mxu0 0.0
        %398 = vmatprep.subr.mxu0 0.0
        %399 = vmatpush1.msra.mxu0 0.0
        %400 = vmatprep.subr.mxu0 0.0
        %401 = vmatpush1.msra.mxu0 0.0
        %402 = vmatprep.subr.mxu0 0.0
        %403 = vmatpush1.msra.mxu0 %v273
        %404 = vmatprep.subr.mxu0 0.0
        %405 = vmatpush1.msra.mxu0 %v272
        %406 = vmatprep.subr.mxu0 0.0
        %407 = vmatpush2.msra.mxu0 0.0
        %408 = vmatprep.subr.mxu0 0.0
        %409 = vmatpush2.msra.mxu0 0.0
        %410 = vmatprep.subr.mxu0 0.0
        %411 = vmatpush2.msra.mxu0 0.0
        %412 = vmatprep.subr.mxu0 0.0
        %413 = vmatpush2.msra.mxu0 0.0
        %414 = vmatprep.subr.mxu0 0.0
        %415 = vmatpush2.msra.mxu0 0.0
        %416 = vmatprep.subr.mxu0 0.0
        %417 = vmatpush2.msra.mxu0 0.0
        %418 = vmatprep.subr.mxu0 0.0
        %419 = vmatpush2.msra.mxu0 0.0
        %420 = vmatprep.subr.mxu0 0.0
        %421 = vmatpush2.msra.mxu0 0.0
        %422 = vmatprep.subr.mxu0 0.0
        %423 = vmatpush2.msra.mxu0 0.0
        %424 = vmatprep.subr.mxu0 0.0
        %425 = vmatpush2.msra.mxu0 0.0
        %426 = vmatprep.subr.mxu0 0.0
        %427 = vmatpush2.msra.mxu0 0.0
        %428 = vmatprep.subr.mxu0 0.0
        %429 = vmatpush2.msra.mxu0 0.0
        %430 = vmatprep.subr.mxu0 0.0
        %431 = vmatpush2.msra.mxu0 0.0
        %432 = vmatprep.subr.mxu0 0.0
        %433 = vmatpush2.msra.mxu0 0.0
        %434 = vmatprep.subr.mxu0 0.0
        %435 = vmatpush2.msra.mxu0 0.0
        %436 = vmatprep.subr.mxu0 0.0
        %437 = vmatpush2.msra.mxu0 0.0
        %438 = vmatprep.mubr.f32.mxu0 0.0
        %439 = vmatmul.mubr.f32.gmra.mxu0 %v369
        %v440 = vpop.f32.mrf.mxu0
        %v441 = vadd.f32 0.0, %v440
        %v442 = vpop.f32.mrf.mxu0
        %443 = vmatprep.mubr.f32.mxu0 0.0
        %444 = vmatmul.mubr.f32.gmra.mxu0 %v372
        %v445 = vpop.f32.mrf.mxu0
        %v446 = vadd.f32 0.0, %v445
        %v447 = vpop.f32.mrf.mxu0
        %448 = vdwg.mxu0
        %s449 = scalar_lea.vmem %s266, 16 [#allocation8]
        %450 = vst.msk [vmem:[%s449] sm:$0xff] %vm360, %v441
        %451 = vst.msk [vmem:[%s449 + $0x8] sm:$0xff] %vm360, %v446
        %s452 = scalar_lea.vmem [#allocation2], 32
        %v453 = vld [vmem:[%s452] sm:$0xff]
        %v454 = vld [vmem:[%s452 + $0x8] sm:$0xff]
        %v455 = vmul.f32 %v453, %v270
        %v456 = vmul.f32 %v454, %v271
        %v458 = vsel %vm278, %v455, 0
        %v461 = vsel %vm278, %v456, 0
        %463 = vmatprep.subr.mxu0 0.0
        %464 = vmatpush1.msra.mxu0 0.0
        %465 = vmatprep.subr.mxu0 0.0
        %466 = vmatpush1.msra.mxu0 0.0
        %467 = vmatprep.subr.mxu0 0.0
        %468 = vmatpush1.msra.mxu0 0.0
        %469 = vmatprep.subr.mxu0 0.0
        %470 = vmatpush1.msra.mxu0 0.0
        %471 = vmatprep.subr.mxu0 0.0
        %472 = vmatpush1.msra.mxu0 0.0
        %473 = vmatprep.subr.mxu0 0.0
        %474 = vmatpush1.msra.mxu0 0.0
        %475 = vmatprep.subr.mxu0 0.0
        %476 = vmatpush1.msra.mxu0 0.0
        %477 = vmatprep.subr.mxu0 0.0
        %478 = vmatpush1.msra.mxu0 0.0
        %479 = vmatprep.subr.mxu0 0.0
        %480 = vmatpush1.msra.mxu0 0.0
        %481 = vmatprep.subr.mxu0 0.0
        %482 = vmatpush1.msra.mxu0 0.0
        %483 = vmatprep.subr.mxu0 0.0
        %484 = vmatpush1.msra.mxu0 0.0
        %485 = vmatprep.subr.mxu0 0.0
        %486 = vmatpush1.msra.mxu0 0.0
        %487 = vmatprep.subr.mxu0 0.0
        %488 = vmatpush1.msra.mxu0 0.0
        %489 = vmatprep.subr.mxu0 0.0
        %490 = vmatpush1.msra.mxu0 0.0
        %491 = vmatprep.subr.mxu0 0.0
        %492 = vmatpush1.msra.mxu0 %v273
        %493 = vmatprep.subr.mxu0 0.0
        %494 = vmatpush1.msra.mxu0 %v272
        %495 = vmatprep.subr.mxu0 0.0
        %496 = vmatpush2.msra.mxu0 0.0
        %497 = vmatprep.subr.mxu0 0.0
        %498 = vmatpush2.msra.mxu0 0.0
        %499 = vmatprep.subr.mxu0 0.0
        %500 = vmatpush2.msra.mxu0 0.0
        %501 = vmatprep.subr.mxu0 0.0
        %502 = vmatpush2.msra.mxu0 0.0
        %503 = vmatprep.subr.mxu0 0.0
        %504 = vmatpush2.msra.mxu0 0.0
        %505 = vmatprep.subr.mxu0 0.0
        %506 = vmatpush2.msra.mxu0 0.0
        %507 = vmatprep.subr.mxu0 0.0
        %508 = vmatpush2.msra.mxu0 0.0
        %509 = vmatprep.subr.mxu0 0.0
        %510 = vmatpush2.msra.mxu0 0.0
        %511 = vmatprep.subr.mxu0 0.0
        %512 = vmatpush2.msra.mxu0 0.0
        %513 = vmatprep.subr.mxu0 0.0
        %514 = vmatpush2.msra.mxu0 0.0
        %515 = vmatprep.subr.mxu0 0.0
        %516 = vmatpush2.msra.mxu0 0.0
        %517 = vmatprep.subr.mxu0 0.0
        %518 = vmatpush2.msra.mxu0 0.0
        %519 = vmatprep.subr.mxu0 0.0
        %520 = vmatpush2.msra.mxu0 0.0
        %521 = vmatprep.subr.mxu0 0.0
        %522 = vmatpush2.msra.mxu0 0.0
        %523 = vmatprep.subr.mxu0 0.0
        %524 = vmatpush2.msra.mxu0 0.0
        %525 = vmatprep.subr.mxu0 0.0
        %526 = vmatpush2.msra.mxu0 0.0
        %527 = vmatprep.mubr.f32.mxu0 0.0
        %528 = vmatmul.mubr.f32.gmra.mxu0 %v458
        %v529 = vpop.f32.mrf.mxu0
        %v530 = vadd.f32 0.0, %v529
        %v531 = vpop.f32.mrf.mxu0
        %532 = vmatprep.mubr.f32.mxu0 0.0
        %533 = vmatmul.mubr.f32.gmra.mxu0 %v461
        %v534 = vpop.f32.mrf.mxu0
        %v535 = vadd.f32 0.0, %v534
        %v536 = vpop.f32.mrf.mxu0
        %537 = vdwg.mxu0
        %s538 = scalar_lea.vmem %s266, 32 [#allocation8]
        %539 = vst.msk [vmem:[%s538] sm:$0xff] %vm360, %v530
        %540 = vst.msk [vmem:[%s538 + $0x8] sm:$0xff] %vm360, %v535
        %s541 = sand.u32 %s123, 1
        %s542 = scalar_lea.sflag [#allocation4], %s541
        %s543 = sand.u32 %s123, 1
        %s544 = smul.addr %s543, 48
        %s545 = scalar_lea.vmem [#allocation8], %s544
        // Predicated region
        $region45: #{tpu_custom_call.1} parent=31 // pred_check
          %p546 = pneg %p133
        $region46: #{tpu_custom_call.1} parent=31 // pred_check_branch
          %548 = sbr.rel (%p546) target = $region48
        $region47: #{tpu_custom_call.1} parent=31 // pred_region
          %s549 = smul.u32 2, %s26
          %s551 = ssub.s32 768, 768
          %552 = vsyncadd %s542, %s551
          %s553 = smul.addr %s25, 6
          %s554 = sadd.s32 %s549, %s553
          %s555 = smul.addr %s554, 128
          %s556 = scalar_lea.hbm %s3, %s555
          %s557 = sshll.u32 %s545, 4
          %s558 = int_to_ptr.vmem [resolvable:$true] %s557
          %563 = dma.vmem_to_hbm [thread:$0]  %s558, 768, %s556, %s542, 128, 128, 8
        $region48: #{tpu_custom_call.1} parent=31 // pred_fallthru
          _
      $region32: #{tpu_custom_call.1} parent=5 // pred_fallthru
        _
      %p564 = scmp.le.s32.totalorder 2, %s16
      // Predicated region
      $region49: #{tpu_custom_call.1} parent=5 // pred_check
        %p565 = pneg %p564
      $region50: #{tpu_custom_call.1} parent=5 // pred_check_branch
        %567 = sbr.rel (%p565) target = $region52
      $region51: #{tpu_custom_call.1} parent=5 // pred_region
        %s568 = ssub.s32 %s16, 2
        // Predicated region
        $region53: #{tpu_custom_call.1} parent=51 // pred_check
          %p569 = pneg %p139
        $region54: #{tpu_custom_call.1} parent=51 // pred_check_branch
          %571 = sbr.rel (%p569) target = $region56
        $region55: #{tpu_custom_call.1} parent=51 // pred_region
          %s572 = sand.u32 %s124, 1
          %s573 = scalar_lea.sflag [#allocation4], %s572
          %s574 = sand.u32 %s124, 1
          %s575 = smul.addr %s574, 48
          %s576 = scalar_lea.vmem [#allocation8], %s575
          %577 = dma.done %s573, 768
        $region56: #{tpu_custom_call.1} parent=51 // pred_fallthru
          _
      $region52: #{tpu_custom_call.1} parent=5 // pred_fallthru
        _
    $region6: #{tpu_custom_call.1} parent=1 // loop_footer
      %s20 = sadd.s32 1, %s16
    $region7: #{tpu_custom_call.1} parent=1 // loop_footer_branch
      %15 = sbr.rel target = $region3
    $region8: #{tpu_custom_call.1} parent=1 // loop_exit
      _
    %578 = vsyncpa [#allocation3], 1
    %s579 = scalar_lea.sflag [#allocation3], 1
    %580 = vsyncpa %s579, 1
    %581 = vsyncpa [#allocation6], 1
    %s582 = scalar_lea.sflag [#allocation6], 1
    %583 = vsyncpa %s582, 1
    %584 = vsyncpa [#allocation4], 1
    %s585 = scalar_lea.sflag [#allocation4], 1
    %586 = vsyncpa %s585, 1

</llo_original>
